<compile_context>
chip_gen: v7x
topology: tpu7x:2x2x1
jax: 0.10.0
libtpu: 0.0.40
codegen_flags: <defaults>
</compile_context>

<pallas_src>
import functools
import math

import jax
import jax.numpy as jnp
from jax import lax
from jax.experimental import pallas as pl
from jax.experimental.pallas import tpu as pltpu


# ----------------------------- small helpers --------------------------------

def _cdiv(a, b):
    return -(-a // b)


def _round_up(x, m):
    return _cdiv(x, m) * m


def _round_down(x, m):
    return (x // m) * m


def _sublane_min(itemsize):
    # Native (sublane, lane) tiling: (8,128) 4-byte, (16,128) 2-byte, (32,128) 1-byte.
    return {1: 32, 2: 16}.get(itemsize, 8)


def _vmem_capacity_bytes():
    try:
        return int(pltpu.get_tpu_info().vmem_capacity_bytes)
    except Exception:
        pass
    try:
        kind = jax.devices()[0].device_kind.lower()
        if "v7" in kind:
            return 64 << 20
    except Exception:
        pass
    return 128 << 20


def _budget_and_target(target_override):
    cap = _vmem_capacity_bytes()
    if cap <= (64 << 20):            # v7x-class: 64 MiB physical per TensorCore
        budget, target = 52 << 20, 12 << 20
    else:                            # v5e / v6e: 128 MiB physical
        budget, target = 100 << 20, 8 << 20
    if target_override is not None:
        target = int(target_override)
    return budget, target


def _result_dtypes(dt):
    """(out_dtype, acc_dtype) mirroring jnp.sum promotion (x64 disabled)."""
    dt = jnp.dtype(dt)
    if jnp.issubdtype(dt, jnp.floating):
        acc = jnp.dtype(jnp.float32) if dt.itemsize < 8 else dt
        return dt, acc
    if jnp.issubdtype(dt, jnp.unsignedinteger):
        o = jnp.dtype(jnp.uint32) if dt.itemsize <= 4 else dt
        return o, o
    o = jnp.dtype(jnp.int32) if dt.itemsize <= 4 else dt
    return o, o


# ------------------------------- kernels -------------------------------------

def _sum_mid_kernel(x_ref, o_ref, *acc, S, seq_tile, acc_dtype):
    """Reduce axis 1 of a (Bt, St, Ht) tile; hidden dim on the lane axis."""
    acc_ref = acc[0] if acc else o_ref
    s = pl.program_id(2)

    @pl.when(s == 0)
    def _init():
        acc_ref[...] = jnp.zeros_like(acc_ref)

    x = x_ref[...].astype(acc_dtype)
    if S % seq_tile != 0:
        # Ragged last seq block: mask the out-of-range rows in-kernel instead
        # of materializing a zero-padded copy of the input in HBM.
        valid = S - s * seq_tile
        row = lax.broadcasted_iota(jnp.int32, x.shape, 1)
        x = jnp.where(row < valid, x, jnp.zeros_like(x))
    acc_ref[...] += jnp.sum(x, axis=1)

    if acc:
        @pl.when(s == pl.num_programs(2) - 1)
        def _fin():
            o_ref[...] = acc_ref[...].astype(o_ref.dtype)


def _sum_last_kernel(x_ref, o_ref, *acc, S, seq_tile, acc_dtype):
    """Reduce axis 1 (the lane axis) of a (Bt, St) tile (reduced dim is last)."""
    acc_ref = acc[0] if acc else o_ref
    s = pl.program_id(1)

    @pl.when(s == 0)
    def _init():
        acc_ref[...] = jnp.zeros_like(acc_ref)

    x = x_ref[...].astype(acc_dtype)
    if S % seq_tile != 0:
        valid = S - s * seq_tile
        col = lax.broadcasted_iota(jnp.int32, x.shape, 1)
        x = jnp.where(col < valid, x, jnp.zeros_like(x))
    acc_ref[...] += jnp.sum(x, axis=1, keepdims=True)

    if acc:
        @pl.when(s == pl.num_programs(1) - 1)
        def _fin():
            o_ref[...] = acc_ref[...].astype(o_ref.dtype)


# ------------------------------- drivers --------------------------------------

def _sum_pool_3d(x, *, seq_tile=None, batch_tile=None, hid_tile=None,
                 target_tile_bytes=None):
    """Sum over dim=1 of a (B, S, H) array -> (B, H)."""
    B, S, H = x.shape
    in_bytes = jnp.dtype(x.dtype).itemsize
    out_dtype, acc_dtype = _result_dtypes(x.dtype)
    out_bytes = jnp.dtype(out_dtype).itemsize
    acc_bytes = jnp.dtype(acc_dtype).itemsize
    with_acc = jnp.dtype(acc_dtype) != jnp.dtype(out_dtype)

    in_sub = _sublane_min(in_bytes)
    out_sub = _sublane_min(out_bytes)
    budget, target = _budget_and_target(target_tile_bytes)

    # Hidden tile: keep full H (lane-contiguous HBM rows, one dense store);
    # only split (multiples of 128) if VMEM forces it below.
    if hid_tile is None or hid_tile >= H:
        hid_tile = H
    else:
        hid_tile = max(128, _round_down(hid_tile, 128))

    # Batch tile: must be == B or a multiple of out_sub (output block alignment).
    def _fix_batch(bt):
        if bt >= B or B <= out_sub:
            return B
        return max(out_sub, _round_down(bt, out_sub))

    if batch_tile is None:
        row_bytes = S * hid_tile * in_bytes          # one batch row, full S
        if row_bytes * B <= target:
            batch_tile = B
        else:
            batch_tile = _fix_batch(max(1, target // max(1, row_bytes)))
    else:
        batch_tile = _fix_batch(batch_tile)

    # Guarantee parallel grid extent >= 2 so v7x's second TensorCore has work
    # (harmless elsewhere: seq_tile below re-fills the per-step byte target).
    if batch_tile >= B and hid_tile >= H:
        cand_b = _round_up(_cdiv(B, 2), out_sub) if B >= 2 else B
        if 0 < cand_b < B:
            batch_tile = cand_b
        elif H >= 256:
            cand_h = _round_up(_cdiv(H, 2), 128)
            if cand_h < H:
                hid_tile = cand_h

    # Seq tile: fill the byte target; must be == S or a multiple of in_sub.
    def _fix_seq(st):
        if st >= S or S <= in_sub:
            return S
        return max(in_sub, _round_down(st, in_sub))

    min_seq = S if S <= in_sub else in_sub
    if seq_tile is None:
        seq_tile = _fix_seq(target // max(1, batch_tile * hid_tile * in_bytes))
    else:
        seq_tile = _fix_seq(seq_tile)

    # Shrink tiles (never just the limit) until the double-buffered working
    # set fits the generation-aware VMEM budget: seq first, then batch, then H.
    def _cost(bt, st, ht):
        c = 2 * bt * st * ht * in_bytes + 2 * bt * ht * out_bytes
        if with_acc:
            c += bt * ht * acc_bytes
        return c

    while _cost(batch_tile, seq_tile, hid_tile) > budget:
        if seq_tile > min_seq:
            new = _fix_seq(max(min_seq, seq_tile // 2))
            if new < seq_tile:
                seq_tile = new
                continue
        if batch_tile > 1:
            new = _fix_batch(batch_tile // 2)
            if new < batch_tile:
                batch_tile = new
                continue
        if hid_tile > 128:
            hid_tile = max(128, _round_down(_cdiv(hid_tile, 2), 128))
            continue
        break

    grid = (_cdiv(B, batch_tile), _cdiv(H, hid_tile), _cdiv(S, seq_tile))
    kernel = functools.partial(_sum_mid_kernel, S=S, seq_tile=seq_tile,
                               acc_dtype=acc_dtype)
    scratch = [pltpu.VMEM((batch_tile, hid_tile), acc_dtype)] if with_acc else []
    vmem_limit = int(min(budget,
                         max(_cost(batch_tile, seq_tile, hid_tile) + (8 << 20),
                             32 << 20)))

    return pl.pallas_call(
        kernel,
        out_shape=jax.ShapeDtypeStruct((B, H), out_dtype),
        grid_spec=pltpu.PrefetchScalarGridSpec(
            num_scalar_prefetch=0,
            grid=grid,
            in_specs=[pl.BlockSpec((batch_tile, seq_tile, hid_tile),
                                   lambda b, h, s: (b, s, h))],
            out_specs=pl.BlockSpec((batch_tile, hid_tile),
                                   lambda b, h, s: (b, h)),
            scratch_shapes=scratch,
        ),
        compiler_params=pltpu.CompilerParams(
            dimension_semantics=("parallel", "parallel", "arbitrary"),
            vmem_limit_bytes=vmem_limit,
        ),
    )(x)


def _sum_pool_2d(x, *, seq_tile=None, batch_tile=None, target_tile_bytes=None):
    """Sum over the last axis of (B, S): the reduced dim occupies the lane axis."""
    B, S = x.shape
    in_bytes = jnp.dtype(x.dtype).itemsize
    out_dtype, acc_dtype = _result_dtypes(x.dtype)
    out_bytes = jnp.dtype(out_dtype).itemsize
    acc_bytes = jnp.dtype(acc_dtype).itemsize
    with_acc = jnp.dtype(acc_dtype) != jnp.dtype(out_dtype)

    bt_sub = max(_sublane_min(in_bytes), _sublane_min(out_bytes))
    budget, target = _budget_and_target(target_tile_bytes)

    def _fix_batch(bt):
        if bt >= B or B <= bt_sub:
            return B
        return max(bt_sub, _round_down(bt, bt_sub))

    def _fix_seq(st):
        if st >= S or S <= 128:
            return S
        return max(128, _round_down(st, 128))

    if batch_tile is None:
        row_bytes = S * in_bytes
        if row_bytes * B <= target:
            batch_tile = B
        else:
            batch_tile = _fix_batch(max(1, target // max(1, row_bytes)))
    else:
        batch_tile = _fix_batch(batch_tile)

    # v7x megacore: give the second TensorCore a parallel batch block if possible.
    if batch_tile >= B and B >= 2:
        cand = _round_up(_cdiv(B, 2), bt_sub)
        if cand < B:
            batch_tile = cand

    if seq_tile is None:
        seq_tile = _fix_seq(target // max(1, batch_tile * in_bytes))
    else:
        seq_tile = _fix_seq(seq_tile)

    def _cost(bt, st):
        c = 2 * bt * st * in_bytes + 2 * bt * out_bytes
        if with_acc:
            c += bt * acc_bytes
        return c

    min_seq = S if S <= 128 else 128
    while _cost(batch_tile, seq_tile) > budget:
        if seq_tile > min_seq:
            new = _fix_seq(max(min_seq, seq_tile // 2))
            if new < seq_tile:
                seq_tile = new
                continue
        if batch_tile > 1:
            new = _fix_batch(batch_tile // 2)
            if new < batch_tile:
                batch_tile = new
                continue
        break

    grid = (_cdiv(B, batch_tile), _cdiv(S, seq_tile))
    kernel = functools.partial(_sum_last_kernel, S=S, seq_tile=seq_tile,
                               acc_dtype=acc_dtype)
    scratch = [pltpu.VMEM((batch_tile, 1), acc_dtype)] if with_acc else []
    vmem_limit = int(min(budget,
                         max(_cost(batch_tile, seq_tile) + (8 << 20), 32 << 20)))

    return pl.pallas_call(
        kernel,
        out_shape=jax.ShapeDtypeStruct((B, 1), out_dtype),
        grid_spec=pltpu.PrefetchScalarGridSpec(
            num_scalar_prefetch=0,
            grid=grid,
            in_specs=[pl.BlockSpec((batch_tile, seq_tile), lambda b, s: (b, s))],
            out_specs=pl.BlockSpec((batch_tile, 1), lambda b, s: (b, 0)),
            scratch_shapes=scratch,
        ),
        compiler_params=pltpu.CompilerParams(
            dimension_semantics=("parallel", "arbitrary"),
            vmem_limit_bytes=vmem_limit,
        ),
    )(x)


# ------------------------------- public API ----------------------------------

def sum_pool(x, dim=1, **tile_kwargs):
    """Equivalent of torch.sum(x, dim=dim) (no keepdims) for any rank."""
    x = jnp.asarray(x)
    ndim = x.ndim
    dim = dim % ndim
    lead, S, trail = x.shape[:dim], x.shape[dim], x.shape[dim + 1:]
    B = math.prod(lead)
    H = math.prod(trail)

    if x.dtype == jnp.bool_:
        # torch.sum promotes bool; accumulate with a TPU-native integer width.
        x = x.astype(jnp.int32)

    if H == 1:
        # Reduced dim is the trailing axis: lane-dense 2-D kernel (reduce lanes).
        out = _sum_pool_2d(x.reshape(B, S), **tile_kwargs)
        return out.reshape(lead + trail)

    # TODO(synk): for 1 < H < 128 a fused lane re-layout (folding part of S
    # into the lane axis) would avoid partially-filled vregs; the current path
    # is correct but uses only H of 128 lanes per vreg.
    out = _sum_pool_3d(x.reshape(B, S, H), **tile_kwargs)
    return out.reshape(lead + trail)


if __name__ == "__main__":
    key = jax.random.PRNGKey(0)

    # 1) Primary: (B, S, H) f32, dim=1 (module default); accumulates directly
    #    into the resident output block (no scratch).
    B, S, H = 2, 16, 32
    x = jax.random.normal(key, (B, S, H), dtype=jnp.float32)
    y = jax.block_until_ready(sum_pool(x, dim=1))
    y_ref = jnp.sum(x, axis=1)
    assert y.shape == y_ref.shape == (B, H)
    assert jnp.allclose(y, y_ref, atol=1e-5, rtol=1e-5)

    # 2) bf16 input: f32 VMEM accumulator, cast back on the final seq block.
    xb = jax.random.normal(jax.random.PRNGKey(1), (2, 64, 128), dtype=jnp.bfloat16)
    yb = jax.block_until_ready(sum_pool(xb, dim=1))
    yb_ref = jnp.sum(xb.astype(jnp.float32), axis=1).astype(jnp.bfloat16)
    assert yb.shape == yb_ref.shape == (2, 128)
    assert jnp.allclose(yb.astype(jnp.float32), yb_ref.astype(jnp.float32),
                        atol=1e-1, rtol=1e-2)

    # 3) Generic rank / dim (reduced dim not last), ragged S handled without pad.
    xc = jax.random.normal(jax.random.PRNGKey(2), (2, 3, 11, 16), dtype=jnp.float32)
    yc_ref = jnp.sum(xc, axis=2)
    yc = jax.block_until_ready(sum_pool(xc, dim=2))
    assert yc.shape == yc_ref.shape == (2, 3, 16)
    assert jnp.allclose(yc, yc_ref, atol=1e-5, rtol=1e-5)

    # 4) Force a ragged last seq block (S=11, seq_tile=8): in-kernel iota mask.
    yd = jax.block_until_ready(sum_pool(xc, dim=2, seq_tile=8))
    assert jnp.allclose(yd, yc_ref, atol=1e-5, rtol=1e-5)

    # 5) Reduced dim is the last axis: lane-dense 2-D path with a masked lane tail.
    xe = jax.random.normal(jax.random.PRNGKey(3), (4, 300), dtype=jnp.float32)
    ye = jax.block_until_ready(sum_pool(xe, dim=1, seq_tile=128))
    ye_ref = jnp.sum(xe, axis=1)
    assert ye.shape == ye_ref.shape == (4,)
    assert jnp.allclose(ye, ye_ref, atol=1e-4, rtol=1e-5)

    # 6) Integer input keeps a wide (int32) result dtype on writeback.
    xi = jax.random.randint(jax.random.PRNGKey(4), (2, 16, 128), -5, 5,
                            dtype=jnp.int32)
    yi = jax.block_until_ready(sum_pool(xi, dim=1))
    assert yi.dtype == jnp.int32
    assert jnp.array_equal(yi, jnp.sum(xi, axis=1))

    print("KERNEL_OK")
</pallas_src>

<mosaic_0001>
module attributes {stable_mosaic.version = 11 : i64} {
  func.func @_sum_mid_kernel(%arg0: i32, %arg1: i32, %arg2: i32, %arg3: memref<2x16x32xf32, #tpu.memory_space<vmem>>, %arg4: memref<2x32xf32, #tpu.memory_space<vmem>>) attributes {dimension_semantics = [#tpu.dimension_semantics<parallel>, #tpu.dimension_semantics<parallel>, #tpu.dimension_semantics<arbitrary>], iteration_bounds = array<i64: 1, 1, 1>, scalar_prefetch = 0 : i64, scratch_operands = 0 : i64, tpu.core_type = #tpu.core_type<tc>, window_params = [{transform_indices = @transform_0, window_bounds = array<i64: 2, 16, 32>}, {transform_indices = @transform_1, window_bounds = array<i64: 2, 32>}]} {
    %c0_i32 = arith.constant 0 : i32
    %0 = arith.cmpi eq, %arg2, %c0_i32 : i32
    %1 = arith.extui %0 : i1 to i32
    %c0_i32_0 = arith.constant 0 : i32
    %2 = arith.cmpi ne, %1, %c0_i32_0 : i32
    scf.if %2 {
      %cst_7 = arith.constant 0.000000e+00 : f32
      %8 = vector.broadcast %cst_7 : f32 to vector<2x32xf32>
      %c0_8 = arith.constant 0 : index
      %c0_9 = arith.constant 0 : index
      %9 = vector.load %arg4[%c0_8, %c0_9] : memref<2x32xf32, #tpu.memory_space<vmem>>, vector<2x32xf32>
      tpu.vector_store %arg4[%c0_8, %c0_9], %8 {strides = array<i32>} : memref<2x32xf32, #tpu.memory_space<vmem>>, vector<2x32xf32>,
    } else {
    }
    %c0 = arith.constant 0 : index
    %c0_1 = arith.constant 0 : index
    %c0_2 = arith.constant 0 : index
    %3 = vector.load %arg3[%c0, %c0_1, %c0_2] : memref<2x16x32xf32, #tpu.memory_space<vmem>>, vector<2x16x32xf32>
    %c0_3 = arith.constant 0 : index
    %c0_4 = arith.constant 0 : index
    %4 = vector.load %arg4[%c0_3, %c0_4] : memref<2x32xf32, #tpu.memory_space<vmem>>, vector<2x32xf32>
    %cst = arith.constant dense<0.000000e+00> : vector<2x32xf32>
    %5 = vector.multi_reduction <add>, %3, %cst [1] : vector<2x16x32xf32> to vector<2x32xf32>
    %6 = arith.addf %4, %5 : vector<2x32xf32>
    %c0_5 = arith.constant 0 : index
    %c0_6 = arith.constant 0 : index
    %7 = vector.load %arg4[%c0_5, %c0_6] : memref<2x32xf32, #tpu.memory_space<vmem>>, vector<2x32xf32>
    tpu.vector_store %arg4[%c0_5, %c0_6], %6 {strides = array<i32>} : memref<2x32xf32, #tpu.memory_space<vmem>>, vector<2x32xf32>,
    return
  }
  func.func @transform_0(%arg0: i32, %arg1: i32, %arg2: i32) -> (i32, i32, i32) {
    %c0_i32 = arith.constant 0 : i32
    return %arg0, %arg2, %arg1 : i32, i32, i32
  }
  func.func @transform_1(%arg0: i32, %arg1: i32, %arg2: i32) -> (i32, i32) {
    %c0_i32 = arith.constant 0 : i32
    return %arg0, %arg1 : i32, i32
  }
}

</mosaic_0001>

<llo_original>
// kernel: tpu_custom_call.1
$region0: #{tpu_custom_call.1}
  #allocation0 [shape = 'u32[]', space=smem, size = 0x4, offset = 0x4, fixed_abs, tag = 'smem constant byte address 0x4 - core index']
  #allocation1 [shape = 'u32[144,128]{1,0:T(1,128)}', space=vmem, size = 0x12000, scoped, tag = 'internal scratch']
  %s0 = inlined_call_operand.hbm [shape: f32[2,16,32], index: 0, kind: input, shape index: {}]
  %s1 = inlined_call_operand.hbm [shape: f32[2,32], index: 1, kind: output, shape index: {}]
  %s2 = sld [smem:[#allocation0]]
  $region22: #{tpu_custom_call.1} parent=0
    _
  %s4 = ssub.s32 1, %s2
  %s5 = scalar_select 0, %s4, %s2
  $region1: #{tpu_custom_call.1} parent=0
    #allocation2 [shape = 'u8[16384]{0}', space=vmem, size = 0x4000, scoped, tag = 'input window, operand 0, single buffered']
    #allocation3 [shape = 's32[1]{0}', space=sflag, size = 0x4, scoped, tag = 'scoped memory for tpu_custom_call.1']
    #allocation4 [shape = 's32[1]{0}', space=sflag, size = 0x4, scoped, tag = 'scoped memory for tpu_custom_call.1']
    #allocation5 [shape = 'u8[1024]{0}', space=vmem, size = 0x400, scoped, tag = 'output window, operand 0, single buffered']
    %6 = vsyncpa [#allocation3], 0
    %7 = vsyncpa [#allocation4], 0
    // Predicated region
    $region2: #{tpu_custom_call.1} parent=1 // pred_check
      _
    $region3: #{tpu_custom_call.1} parent=1 // pred_check_branch
      %9 = sbr.rel (0) target = $region5
    $region4: #{tpu_custom_call.1} parent=1 // pred_region
      %s11 = ssub.s32 512, 512
      %12 = vsyncadd [#allocation3], %s11
      %s13 = sshll.u32 [#allocation2], 4
      %s14 = int_to_ptr.vmem [resolvable:$true] %s13
      %19 = dma.hbm_to_vmem [thread:$0]  %s0, 512, %s14, [#allocation3], 128, 128, 8
    $region5: #{tpu_custom_call.1} parent=1 // pred_fallthru
      _
    // Predicated region
    $region6: #{tpu_custom_call.1} parent=1 // pred_check
      _
    $region7: #{tpu_custom_call.1} parent=1 // pred_check_branch
      %21 = sbr.rel (0) target = $region9
    $region8: #{tpu_custom_call.1} parent=1 // pred_region
      %22 = dma.done [#allocation3], 512
    $region9: #{tpu_custom_call.1} parent=1 // pred_fallthru
      _
    %p23 = scmp.eq.s32.totalorder 0, 0
    // Predicated region
    $region10: #{tpu_custom_call.1} parent=1 // pred_check
      %p24 = pneg %p23
    $region11: #{tpu_custom_call.1} parent=1 // pred_check_branch
      %26 = sbr.rel (%p24) target = $region13
    $region12: #{tpu_custom_call.1} parent=1 // pred_region
      %vm27 = vcmask 254976
      %28 = vst.msk [vmem:[#allocation5] sm:$0x3] %vm27, 0.0
    $region13: #{tpu_custom_call.1} parent=1 // pred_fallthru
      _
    %v29 = vld [vmem:[#allocation2] sm:$0xff]
    %v30 = vld [vmem:[#allocation2 + $0x8] sm:$0xff]
    %v31 = vld [vmem:[#allocation2 + $0x10] sm:$0xff]
    %v32 = vld [vmem:[#allocation2 + $0x18] sm:$0xff]
    %v33 = vld [vmem:[#allocation5] sm:$0x3]
    %vm34 = vcmask 261120
    %v35 = vsel %vm34, %v29, 0.0
    %v36 = vsel %vm34, %v30, 0.0
    %v37 = vadd.f32 %v35, %v36
    %v38 = vrot.slane %v37, 4
    %v39 = vadd.f32 %v37, %v38
    %v40 = vrot.slane %v39, 2
    %v41 = vadd.f32 %v39, %v40
    %v42 = vrot.slane %v41, 1
    %v43 = vadd.f32 %v41, %v42
    %v44 = vsel %vm34, %v31, 0.0
    %v45 = vsel %vm34, %v32, 0.0
    %v46 = vadd.f32 %v44, %v45
    %v47 = vrot.slane %v46, 4
    %v48 = vadd.f32 %v46, %v47
    %v49 = vrot.slane %v48, 2
    %v50 = vadd.f32 %v48, %v49
    %v51 = vrot.slane %v50, 1
    %v52 = vadd.f32 %v50, %v51
    %vm55 = vcmask 1041409
    %v56 = vsel %vm55, %v52, %v43
    %v58 = vadd.f32 %v33, %v56
    %vm59 = vcmask 254976
    %60 = vst.msk [vmem:[#allocation5] sm:$0x3] %vm59, %v58
    // Predicated region
    $region14: #{tpu_custom_call.1} parent=1 // pred_check
      _
    $region15: #{tpu_custom_call.1} parent=1 // pred_check_branch
      %62 = sbr.rel (0) target = $region17
    $region16: #{tpu_custom_call.1} parent=1 // pred_region
      %s64 = ssub.s32 32, 32
      %65 = vsyncadd [#allocation4], %s64
      %s67 = sshll.u32 [#allocation5], 4
      %s68 = int_to_ptr.vmem [resolvable:$true] %s67
      %70 = dma.vmem_to_hbm [thread:$0]  %s68, 32, %s1, [#allocation4]
    $region17: #{tpu_custom_call.1} parent=1 // pred_fallthru
      _
    // Predicated region
    $region18: #{tpu_custom_call.1} parent=1 // pred_check
      _
    $region19: #{tpu_custom_call.1} parent=1 // pred_check_branch
      %72 = sbr.rel (0) target = $region21
    $region20: #{tpu_custom_call.1} parent=1 // pred_region
      %73 = dma.done [#allocation4], 32
    $region21: #{tpu_custom_call.1} parent=1 // pred_fallthru
      _
    %74 = vsyncpa [#allocation3], 1
    %75 = vsyncpa [#allocation4], 1

</llo_original>
